<compile_context>
chip_gen: v6e
topology: v6e:2x2x1
jax: 0.10.0
libtpu: 0.0.40
codegen_flags: <defaults>
</compile_context>

<pallas_src>
import functools

import jax
import jax.numpy as jnp
from jax.experimental import pallas as pl
from jax.experimental.pallas import tpu as pltpu

MAX_BYTES = 16
NUM_WORDS = MAX_BYTES // 4                          # 4 int32 words per string
VOCAB_STRINGS = ('地雷妹', '御姐', '少萝', '小仙女')    # member -> '妈妈'
NUM_VOCAB = len(VOCAB_STRINGS)
POS_RESULT = '妈妈'
NEG_RESULT = '哥们'


def _encode_words(s: str) -> tuple:
    """Host-side glue: UTF-8 encode, zero-pad to 16 bytes, pack to 4 int32 words."""
    b = s.encode('utf-8')[:MAX_BYTES]
    b = b + b'\x00' * (MAX_BYTES - len(b))
    words = []
    for k in range(NUM_WORDS):
        w = int.from_bytes(b[4 * k:4 * k + 4], 'little', signed=False)
        if w >= (1 << 31):                          # keep in int32 range (two's complement)
            w -= (1 << 32)
        words.append(w)
    return tuple(words)


def _membership_kernel(q_ref, vocab_ref, out_ref):
    # q_ref:     (1, NUM_WORDS)         int32 SMEM  -- packed query
    # vocab_ref: (NUM_VOCAB, NUM_WORDS) int32 SMEM  -- packed vocabulary rows
    # out_ref:   (1, 1)                 int32 SMEM  -- 1 iff query == some vocab row
    # Tiny fixed trip counts -> fully unrolled scalar compares (scalar ALU only).
    match = jnp.int32(0)
    for i in range(NUM_VOCAB):
        row_eq = jnp.int32(1)
        for j in range(NUM_WORDS):
            row_eq = row_eq & (vocab_ref[i, j] == q_ref[0, j]).astype(jnp.int32)
        match = match | row_eq
    out_ref[0, 0] = match


# Built once; all-SMEM, no grid (single step, arrays used at full shape).
_membership = jax.jit(
    pl.pallas_call(
        _membership_kernel,
        out_shape=jax.ShapeDtypeStruct((1, 1), jnp.int32),
        in_specs=[
            pl.BlockSpec(memory_space=pltpu.MemorySpace.SMEM),
            pl.BlockSpec(memory_space=pltpu.MemorySpace.SMEM),
        ],
        out_specs=pl.BlockSpec(memory_space=pltpu.MemorySpace.SMEM),
    )
)

# Packed vocab table, uploaded once: (4, 4) int32.
_VOCAB_DEV = jnp.asarray([_encode_words(s) for s in VOCAB_STRINGS], dtype=jnp.int32)


@functools.lru_cache(maxsize=None)
def _is_member(teammate_type: str) -> bool:
    # Strings longer than MAX_BYTES can never equal a (shorter, zero-padded)
    # vocab row; short-circuit host-side so truncation never changes semantics.
    if len(teammate_type.encode('utf-8')) > MAX_BYTES:
        return False
    query = jnp.asarray([_encode_words(teammate_type)], dtype=jnp.int32)    # (1, 4)
    out = _membership(query, _VOCAB_DEV)
    return bool(int(jax.block_until_ready(out)[0, 0]))


class WaXueDi:
    """JAX/Pallas port of the PyTorch WaXueDi module."""

    def __init__(self):
        # Deterministic "parameters" are the module-level packed vocab table.
        pass

    def forward(self, teammate_type: str) -> str:
        # TODO(synk): the str->int32 packing and the final Chinese-string
        # selection are inherently host-side Python; only the membership test
        # runs on TPU (scalar path).
        return POS_RESULT if _is_member(teammate_type) else NEG_RESULT

    __call__ = forward


if __name__ == "__main__":
    model = WaXueDi()

    # Deterministic example inputs chosen via PRNGKey(0).
    candidates = ['地雷妹', '御姐', '少萝', '小仙女', '奶茶妹', '网管', '路人甲', '哥布林']
    key = jax.random.PRNGKey(0)
    idx = jax.block_until_ready(jax.random.randint(key, (4,), 0, len(candidates)))

    ok = True
    for i in list(idx):
        s = candidates[int(i)]
        got = model(s)
        want = POS_RESULT if s in VOCAB_STRINGS else NEG_RESULT
        if got != want:
            ok = False
            print(f"MISMATCH: input={s!r} got={got!r} want={want!r}")

    # Explicitly exercise both branches through the kernel.
    if model('御姐') != POS_RESULT:
        ok = False
        print("MISMATCH: '御姐' should be a member")
    if model('网管') != NEG_RESULT:
        ok = False
        print("MISMATCH: '网管' should not be a member")

    if ok:
        print("KERNEL_OK")
</pallas_src>

<mosaic_0001>
module attributes {stable_mosaic.version = 11 : i64} {
  func.func @_membership_kernel(%arg0: memref<1x4xi32, #tpu.memory_space<smem>>, %arg1: memref<4x4xi32, #tpu.memory_space<smem>>, %arg2: memref<1x1xi32, #tpu.memory_space<smem>>) attributes {dimension_semantics = [], scalar_prefetch = 0 : i64, scratch_operands = 0 : i64, tpu.core_type = #tpu.core_type<tc>} {
    %c0 = arith.constant 0 : index
    %c0_0 = arith.constant 0 : index
    %0 = memref.load %arg1[%c0, %c0_0] : memref<4x4xi32, #tpu.memory_space<smem>>
    %c0_1 = arith.constant 0 : index
    %c0_2 = arith.constant 0 : index
    %1 = memref.load %arg0[%c0_1, %c0_2] : memref<1x4xi32, #tpu.memory_space<smem>>
    %2 = arith.cmpi eq, %0, %1 : i32
    %3 = arith.extui %2 : i1 to i32
    %c1_i32 = arith.constant 1 : i32
    %4 = arith.andi %c1_i32, %3 : i32
    %c0_3 = arith.constant 0 : index
    %c1 = arith.constant 1 : index
    %5 = memref.load %arg1[%c0_3, %c1] : memref<4x4xi32, #tpu.memory_space<smem>>
    %c0_4 = arith.constant 0 : index
    %c1_5 = arith.constant 1 : index
    %6 = memref.load %arg0[%c0_4, %c1_5] : memref<1x4xi32, #tpu.memory_space<smem>>
    %7 = arith.cmpi eq, %5, %6 : i32
    %8 = arith.extui %7 : i1 to i32
    %9 = arith.andi %4, %8 : i32
    %c0_6 = arith.constant 0 : index
    %c2 = arith.constant 2 : index
    %10 = memref.load %arg1[%c0_6, %c2] : memref<4x4xi32, #tpu.memory_space<smem>>
    %c0_7 = arith.constant 0 : index
    %c2_8 = arith.constant 2 : index
    %11 = memref.load %arg0[%c0_7, %c2_8] : memref<1x4xi32, #tpu.memory_space<smem>>
    %12 = arith.cmpi eq, %10, %11 : i32
    %13 = arith.extui %12 : i1 to i32
    %14 = arith.andi %9, %13 : i32
    %c0_9 = arith.constant 0 : index
    %c3 = arith.constant 3 : index
    %15 = memref.load %arg1[%c0_9, %c3] : memref<4x4xi32, #tpu.memory_space<smem>>
    %c0_10 = arith.constant 0 : index
    %c3_11 = arith.constant 3 : index
    %16 = memref.load %arg0[%c0_10, %c3_11] : memref<1x4xi32, #tpu.memory_space<smem>>
    %17 = arith.cmpi eq, %15, %16 : i32
    %18 = arith.extui %17 : i1 to i32
    %19 = arith.andi %14, %18 : i32
    %c0_i32 = arith.constant 0 : i32
    %20 = arith.ori %c0_i32, %19 : i32
    %c1_12 = arith.constant 1 : index
    %c0_13 = arith.constant 0 : index
    %21 = memref.load %arg1[%c1_12, %c0_13] : memref<4x4xi32, #tpu.memory_space<smem>>
    %c0_14 = arith.constant 0 : index
    %c0_15 = arith.constant 0 : index
    %22 = memref.load %arg0[%c0_14, %c0_15] : memref<1x4xi32, #tpu.memory_space<smem>>
    %23 = arith.cmpi eq, %21, %22 : i32
    %24 = arith.extui %23 : i1 to i32
    %c1_i32_16 = arith.constant 1 : i32
    %25 = arith.andi %c1_i32_16, %24 : i32
    %c1_17 = arith.constant 1 : index
    %c1_18 = arith.constant 1 : index
    %26 = memref.load %arg1[%c1_17, %c1_18] : memref<4x4xi32, #tpu.memory_space<smem>>
    %c0_19 = arith.constant 0 : index
    %c1_20 = arith.constant 1 : index
    %27 = memref.load %arg0[%c0_19, %c1_20] : memref<1x4xi32, #tpu.memory_space<smem>>
    %28 = arith.cmpi eq, %26, %27 : i32
    %29 = arith.extui %28 : i1 to i32
    %30 = arith.andi %25, %29 : i32
    %c1_21 = arith.constant 1 : index
    %c2_22 = arith.constant 2 : index
    %31 = memref.load %arg1[%c1_21, %c2_22] : memref<4x4xi32, #tpu.memory_space<smem>>
    %c0_23 = arith.constant 0 : index
    %c2_24 = arith.constant 2 : index
    %32 = memref.load %arg0[%c0_23, %c2_24] : memref<1x4xi32, #tpu.memory_space<smem>>
    %33 = arith.cmpi eq, %31, %32 : i32
    %34 = arith.extui %33 : i1 to i32
    %35 = arith.andi %30, %34 : i32
    %c1_25 = arith.constant 1 : index
    %c3_26 = arith.constant 3 : index
    %36 = memref.load %arg1[%c1_25, %c3_26] : memref<4x4xi32, #tpu.memory_space<smem>>
    %c0_27 = arith.constant 0 : index
    %c3_28 = arith.constant 3 : index
    %37 = memref.load %arg0[%c0_27, %c3_28] : memref<1x4xi32, #tpu.memory_space<smem>>
    %38 = arith.cmpi eq, %36, %37 : i32
    %39 = arith.extui %38 : i1 to i32
    %40 = arith.andi %35, %39 : i32
    %41 = arith.ori %20, %40 : i32
    %c2_29 = arith.constant 2 : index
    %c0_30 = arith.constant 0 : index
    %42 = memref.load %arg1[%c2_29, %c0_30] : memref<4x4xi32, #tpu.memory_space<smem>>
    %c0_31 = arith.constant 0 : index
    %c0_32 = arith.constant 0 : index
    %43 = memref.load %arg0[%c0_31, %c0_32] : memref<1x4xi32, #tpu.memory_space<smem>>
    %44 = arith.cmpi eq, %42, %43 : i32
    %45 = arith.extui %44 : i1 to i32
    %c1_i32_33 = arith.constant 1 : i32
    %46 = arith.andi %c1_i32_33, %45 : i32
    %c2_34 = arith.constant 2 : index
    %c1_35 = arith.constant 1 : index
    %47 = memref.load %arg1[%c2_34, %c1_35] : memref<4x4xi32, #tpu.memory_space<smem>>
    %c0_36 = arith.constant 0 : index
    %c1_37 = arith.constant 1 : index
    %48 = memref.load %arg0[%c0_36, %c1_37] : memref<1x4xi32, #tpu.memory_space<smem>>
    %49 = arith.cmpi eq, %47, %48 : i32
    %50 = arith.extui %49 : i1 to i32
    %51 = arith.andi %46, %50 : i32
    %c2_38 = arith.constant 2 : index
    %c2_39 = arith.constant 2 : index
    %52 = memref.load %arg1[%c2_38, %c2_39] : memref<4x4xi32, #tpu.memory_space<smem>>
    %c0_40 = arith.constant 0 : index
    %c2_41 = arith.constant 2 : index
    %53 = memref.load %arg0[%c0_40, %c2_41] : memref<1x4xi32, #tpu.memory_space<smem>>
    %54 = arith.cmpi eq, %52, %53 : i32
    %55 = arith.extui %54 : i1 to i32
    %56 = arith.andi %51, %55 : i32
    %c2_42 = arith.constant 2 : index
    %c3_43 = arith.constant 3 : index
    %57 = memref.load %arg1[%c2_42, %c3_43] : memref<4x4xi32, #tpu.memory_space<smem>>
    %c0_44 = arith.constant 0 : index
    %c3_45 = arith.constant 3 : index
    %58 = memref.load %arg0[%c0_44, %c3_45] : memref<1x4xi32, #tpu.memory_space<smem>>
    %59 = arith.cmpi eq, %57, %58 : i32
    %60 = arith.extui %59 : i1 to i32
    %61 = arith.andi %56, %60 : i32
    %62 = arith.ori %41, %61 : i32
    %c3_46 = arith.constant 3 : index
    %c0_47 = arith.constant 0 : index
    %63 = memref.load %arg1[%c3_46, %c0_47] : memref<4x4xi32, #tpu.memory_space<smem>>
    %c0_48 = arith.constant 0 : index
    %c0_49 = arith.constant 0 : index
    %64 = memref.load %arg0[%c0_48, %c0_49] : memref<1x4xi32, #tpu.memory_space<smem>>
    %65 = arith.cmpi eq, %63, %64 : i32
    %66 = arith.extui %65 : i1 to i32
    %c1_i32_50 = arith.constant 1 : i32
    %67 = arith.andi %c1_i32_50, %66 : i32
    %c3_51 = arith.constant 3 : index
    %c1_52 = arith.constant 1 : index
    %68 = memref.load %arg1[%c3_51, %c1_52] : memref<4x4xi32, #tpu.memory_space<smem>>
    %c0_53 = arith.constant 0 : index
    %c1_54 = arith.constant 1 : index
    %69 = memref.load %arg0[%c0_53, %c1_54] : memref<1x4xi32, #tpu.memory_space<smem>>
    %70 = arith.cmpi eq, %68, %69 : i32
    %71 = arith.extui %70 : i1 to i32
    %72 = arith.andi %67, %71 : i32
    %c3_55 = arith.constant 3 : index
    %c2_56 = arith.constant 2 : index
    %73 = memref.load %arg1[%c3_55, %c2_56] : memref<4x4xi32, #tpu.memory_space<smem>>
    %c0_57 = arith.constant 0 : index
    %c2_58 = arith.constant 2 : index
    %74 = memref.load %arg0[%c0_57, %c2_58] : memref<1x4xi32, #tpu.memory_space<smem>>
    %75 = arith.cmpi eq, %73, %74 : i32
    %76 = arith.extui %75 : i1 to i32
    %77 = arith.andi %72, %76 : i32
    %c3_59 = arith.constant 3 : index
    %c3_60 = arith.constant 3 : index
    %78 = memref.load %arg1[%c3_59, %c3_60] : memref<4x4xi32, #tpu.memory_space<smem>>
    %c0_61 = arith.constant 0 : index
    %c3_62 = arith.constant 3 : index
    %79 = memref.load %arg0[%c0_61, %c3_62] : memref<1x4xi32, #tpu.memory_space<smem>>
    %80 = arith.cmpi eq, %78, %79 : i32
    %81 = arith.extui %80 : i1 to i32
    %82 = arith.andi %77, %81 : i32
    %83 = arith.ori %62, %82 : i32
    %c0_63 = arith.constant 0 : index
    %c0_64 = arith.constant 0 : index
    %84 = memref.load %arg2[%c0_63, %c0_64] : memref<1x1xi32, #tpu.memory_space<smem>>
    memref.store %83, %arg2[%c0_63, %c0_64] : memref<1x1xi32, #tpu.memory_space<smem>>
    return
  }
}

</mosaic_0001>

<llo_original>
// kernel: tpu_custom_call.1
$region0: #{tpu_custom_call.1}
  #allocation0 [shape = 'u32[]', space=smem, size = 0x4, offset = 0x4, fixed_abs, tag = 'smem constant byte address 0x4 - core index']
  #allocation1 [shape = 'u32[144,128]{1,0:T(1,128)}', space=vmem, size = 0x12000, scoped, tag = 'internal scratch']
  %s0 = inlined_call_operand.hbm [shape: s32[1,4], index: 0, kind: input, shape index: {}]
  %s1 = inlined_call_operand.hbm [shape: s32[4,4], index: 1, kind: input, shape index: {}]
  %s2 = inlined_call_operand.hbm [shape: s32[1,1], index: 2, kind: output, shape index: {}]
  %s3 = sld [smem:[#allocation0]]
  $region26: #{tpu_custom_call.1} parent=0
    _
  %s5 = ssub.s32 1, %s3
  %s6 = scalar_select 0, %s5, %s3
  $region1: #{tpu_custom_call.1} parent=0
    #allocation2 [shape = 'u8[512]{0}', space=smem, size = 0x200, scoped, tag = 'input window, operand 0, single buffered']
    #allocation3 [shape = 's32[1]{0}', space=sflag, size = 0x4, scoped, tag = 'scoped memory for tpu_custom_call.1']
    #allocation4 [shape = 's32[1]{0}', space=sflag, size = 0x4, scoped, tag = 'scoped memory for tpu_custom_call.1']
    #allocation5 [shape = 'u8[2048]{0}', space=smem, size = 0x800, scoped, tag = 'input window, operand 1, single buffered']
    #allocation6 [shape = 's32[1]{0}', space=sflag, size = 0x4, scoped, tag = 'scoped memory for tpu_custom_call.1']
    #allocation7 [shape = 'u8[512]{0}', space=smem, size = 0x200, scoped, tag = 'output window, operand 0, single buffered']
    %7 = vsyncpa [#allocation3], 0
    %8 = vsyncpa [#allocation6], 0
    %9 = vsyncpa [#allocation4], 0
    // Predicated region
    $region2: #{tpu_custom_call.1} parent=1 // pred_check
      _
    $region3: #{tpu_custom_call.1} parent=1 // pred_check_branch
      %11 = sbr.rel (0) target = $region5
    $region4: #{tpu_custom_call.1} parent=1 // pred_region
      %s13 = ssub.s32 16, 16
      %14 = vsyncadd [#allocation3], %s13
      %17 = dma.hbm_to_smem %s0, 16, [#allocation2], [#allocation3]
    $region5: #{tpu_custom_call.1} parent=1 // pred_fallthru
      _
    // Predicated region
    $region6: #{tpu_custom_call.1} parent=1 // pred_check
      _
    $region7: #{tpu_custom_call.1} parent=1 // pred_check_branch
      %19 = sbr.rel (0) target = $region9
    $region8: #{tpu_custom_call.1} parent=1 // pred_region
      %s21 = ssub.s32 64, 64
      %22 = vsyncadd [#allocation6], %s21
      %25 = dma.hbm_to_smem %s1, 64, [#allocation5], [#allocation6]
    $region9: #{tpu_custom_call.1} parent=1 // pred_fallthru
      _
    // Predicated region
    $region10: #{tpu_custom_call.1} parent=1 // pred_check
      _
    $region11: #{tpu_custom_call.1} parent=1 // pred_check_branch
      %27 = sbr.rel (0) target = $region13
    $region12: #{tpu_custom_call.1} parent=1 // pred_region
      %28 = dma.done [#allocation3], 16
    $region13: #{tpu_custom_call.1} parent=1 // pred_fallthru
      _
    // Predicated region
    $region14: #{tpu_custom_call.1} parent=1 // pred_check
      _
    $region15: #{tpu_custom_call.1} parent=1 // pred_check_branch
      %30 = sbr.rel (0) target = $region17
    $region16: #{tpu_custom_call.1} parent=1 // pred_region
      %31 = dma.done [#allocation6], 64
    $region17: #{tpu_custom_call.1} parent=1 // pred_fallthru
      _
    %32 = sfence
    %s33 = sld [smem:[#allocation5]]
    %s34 = sld [smem:[#allocation2]]
    %p35 = scmp.eq.s32.totalorder %s33, %s34
    %s36 = scalar_select %p35, 1, 0
    %s37 = sand.u32 %s36, 1
    %s38 = sld [smem:[#allocation5 + $0x1]]
    %s39 = sld [smem:[#allocation2 + $0x1]]
    %p40 = scmp.eq.s32.totalorder %s38, %s39
    %s41 = scalar_select %p40, 1, 0
    %s42 = sand.u32 %s37, %s41
    %s43 = sld [smem:[#allocation5 + $0x2]]
    %s44 = sld [smem:[#allocation2 + $0x2]]
    %p45 = scmp.eq.s32.totalorder %s43, %s44
    %s46 = scalar_select %p45, 1, 0
    %s47 = sand.u32 %s42, %s46
    %s48 = sld [smem:[#allocation5 + $0x3]]
    %s49 = sld [smem:[#allocation2 + $0x3]]
    %p50 = scmp.eq.s32.totalorder %s48, %s49
    %s51 = scalar_select %p50, 1, 0
    %s52 = sand.u32 %s47, %s51
    %s53 = sld [smem:[#allocation5 + $0x80]]
    %p54 = scmp.eq.s32.totalorder %s53, %s34
    %s55 = scalar_select %p54, 1, 0
    %s56 = sand.u32 %s55, 1
    %s57 = sld [smem:[#allocation5 + $0x81]]
    %p58 = scmp.eq.s32.totalorder %s57, %s39
    %s59 = scalar_select %p58, 1, 0
    %s60 = sand.u32 %s56, %s59
    %s61 = sld [smem:[#allocation5 + $0x82]]
    %p62 = scmp.eq.s32.totalorder %s61, %s44
    %s63 = scalar_select %p62, 1, 0
    %s64 = sand.u32 %s60, %s63
    %s65 = sld [smem:[#allocation5 + $0x83]]
    %p66 = scmp.eq.s32.totalorder %s65, %s49
    %s67 = scalar_select %p66, 1, 0
    %s68 = sand.u32 %s64, %s67
    %s69 = sor.u32 %s52, %s68
    %s70 = sld [smem:[#allocation5 + $0x100]]
    %p71 = scmp.eq.s32.totalorder %s70, %s34
    %s72 = scalar_select %p71, 1, 0
    %s73 = sand.u32 %s72, 1
    %s74 = sld [smem:[#allocation5 + $0x101]]
    %p75 = scmp.eq.s32.totalorder %s74, %s39
    %s76 = scalar_select %p75, 1, 0
    %s77 = sand.u32 %s73, %s76
    %s78 = sld [smem:[#allocation5 + $0x102]]
    %p79 = scmp.eq.s32.totalorder %s78, %s44
    %s80 = scalar_select %p79, 1, 0
    %s81 = sand.u32 %s77, %s80
    %s82 = sld [smem:[#allocation5 + $0x103]]
    %p83 = scmp.eq.s32.totalorder %s82, %s49
    %s84 = scalar_select %p83, 1, 0
    %s85 = sand.u32 %s81, %s84
    %s86 = sor.u32 %s69, %s85
    %s87 = sld [smem:[#allocation5 + $0x180]]
    %p88 = scmp.eq.s32.totalorder %s87, %s34
    %s89 = scalar_select %p88, 1, 0
    %s90 = sand.u32 %s89, 1
    %s91 = sld [smem:[#allocation5 + $0x181]]
    %p92 = scmp.eq.s32.totalorder %s91, %s39
    %s93 = scalar_select %p92, 1, 0
    %s94 = sand.u32 %s90, %s93
    %s95 = sld [smem:[#allocation5 + $0x182]]
    %p96 = scmp.eq.s32.totalorder %s95, %s44
    %s97 = scalar_select %p96, 1, 0
    %s98 = sand.u32 %s94, %s97
    %s99 = sld [smem:[#allocation5 + $0x183]]
    %p100 = scmp.eq.s32.totalorder %s99, %s49
    %s101 = scalar_select %p100, 1, 0
    %s102 = sand.u32 %s98, %s101
    %s103 = sor.u32 %s86, %s102
    %s104 = scalar_lea.smem [#allocation7], 0
    %105 = sst [smem:[%s104]] %s103
    // Predicated region
    $region18: #{tpu_custom_call.1} parent=1 // pred_check
      _
    $region19: #{tpu_custom_call.1} parent=1 // pred_check_branch
      %107 = sbr.rel (0) target = $region21
    $region20: #{tpu_custom_call.1} parent=1 // pred_region
      %s109 = ssub.s32 16, 16
      %110 = vsyncadd [#allocation4], %s109
      %113 = dma.smem_to_hbm [#allocation7], 16, %s2, [#allocation4]
    $region21: #{tpu_custom_call.1} parent=1 // pred_fallthru
      _
    // Predicated region
    $region22: #{tpu_custom_call.1} parent=1 // pred_check
      _
    $region23: #{tpu_custom_call.1} parent=1 // pred_check_branch
      %115 = sbr.rel (0) target = $region25
    $region24: #{tpu_custom_call.1} parent=1 // pred_region
      %116 = dma.done [#allocation4], 16
    $region25: #{tpu_custom_call.1} parent=1 // pred_fallthru
      _
    %117 = sfence
    %118 = vsyncpa [#allocation3], 1
    %119 = vsyncpa [#allocation6], 1
    %120 = vsyncpa [#allocation4], 1

</llo_original>
